<compile_context>
chip_gen: v7x
topology: tpu7x:2x2x1
jax: 0.10.0
libtpu: 0.0.40
codegen_flags: <defaults>
</compile_context>

<pallas_src>
import jax
import jax.numpy as jnp
from jax.experimental import pallas as pl
from jax.experimental.pallas import tpu as pltpu


# ------------------------------ Pallas kernel -------------------------------
def _shift_prev(v):
    """Row t of result holds v[t-1]; row 0 is zero (left zero-padding)."""
    return jnp.concatenate([jnp.zeros_like(v[:1]), v[:-1]], axis=0)


def _shift_next(v):
    """Row t of result holds v[t+1]; last row is zero (right zero-padding)."""
    return jnp.concatenate([v[1:], jnp.zeros_like(v[:1])], axis=0)


def _tdnn_layer(v, w_ref, p_ref):
    """Conv1d(k=3, pad=1) over time -> ReLU -> eval-mode BatchNorm1d.

    v:      (T, Cin) f32; time on sublanes, channels on lanes.
    w_ref:  (3, Cin, Cout) VMEM ref; taps for frames [t-1, t, t+1].
    p_ref:  (3, Cout)      VMEM ref; rows = [conv bias, bn scale, bn shift].
    """
    z = jnp.dot(_shift_prev(v), w_ref[0], preferred_element_type=jnp.float32)
    z = z + jnp.dot(v, w_ref[1], preferred_element_type=jnp.float32)
    z = z + jnp.dot(_shift_next(v), w_ref[2], preferred_element_type=jnp.float32)
    p = p_ref[...]                                   # (3, Cout)
    z = jnp.maximum(z + p[0:1, :], 0.0)              # conv bias + ReLU
    return z * p[1:2, :] + p[2:3, :]                 # folded eval-mode BatchNorm1d


def tdnn_block_v6_kernel(x_ref, w1_ref, p1_ref, w2_ref, p2_ref, o_ref):
    x = x_ref[0]                                     # (T, Cin)
    h = _tdnn_layer(x, w1_ref, p1_ref)               # (T, Cmid)
    y = _tdnn_layer(h, w2_ref, p2_ref)               # (T, Cout == Cin)
    o_ref[0] = jnp.maximum(y + x, 0.0).astype(o_ref.dtype)   # residual + ReLU


# --------------------------------- wrapper ----------------------------------
def tdnn_block_v6(x, w1, b1, bn1, w2, b2, bn2, *, eps=1e-5):
    """TDNNBlock_v6 forward.

    x:   (B, T, C) float32.
    w1:  (Cmid, Cin, 3)  PyTorch Conv1d weight layout;  b1: (Cmid,)
    w2:  (Cout, Cmid, 3)                               b2: (Cout,)
    bn1/bn2: tuples (gamma, beta, running_mean, running_var) per layer.
    """
    B, T, c_in = x.shape
    c_mid = w1.shape[0]
    c_out = w2.shape[0]
    assert w1.shape == (c_mid, c_in, 3)
    assert w2.shape == (c_out, c_mid, 3)
    assert c_out == c_in, "residual connection requires planes == inplanes"

    # Re-layout conv weights to (tap, Cin, Cout) so each tap is a 2-D matmul.
    w1_k = jnp.transpose(w1, (2, 1, 0)).astype(jnp.float32)   # (3, Cin, Cmid)
    w2_k = jnp.transpose(w2, (2, 1, 0)).astype(jnp.float32)   # (3, Cmid, Cout)

    def pack(b, bn):
        gamma, beta, mean, var = bn
        scale = gamma * jax.lax.rsqrt(var.astype(jnp.float32) + eps)
        shift = beta - mean * scale
        return jnp.stack([b, scale, shift], axis=0).astype(jnp.float32)  # (3, C)

    p1 = pack(b1, bn1)        # (3, Cmid)
    p2 = pack(b2, bn2)        # (3, Cout)

    flops = 2 * B * T * 3 * (c_in * c_mid + c_mid * c_out)
    bytes_accessed = 4 * (x.size + B * T * c_out
                          + w1_k.size + w2_k.size + p1.size + p2.size)

    return pl.pallas_call(
        tdnn_block_v6_kernel,
        out_shape=jax.ShapeDtypeStruct((B, T, c_out), x.dtype),
        grid=(B,),
        in_specs=[
            pl.BlockSpec((1, T, c_in), lambda b: (b, 0, 0)),
            pl.BlockSpec((3, c_in, c_mid), lambda b: (0, 0, 0)),
            pl.BlockSpec((3, c_mid), lambda b: (0, 0)),
            pl.BlockSpec((3, c_mid, c_out), lambda b: (0, 0, 0)),
            pl.BlockSpec((3, c_out), lambda b: (0, 0)),
        ],
        out_specs=pl.BlockSpec((1, T, c_out), lambda b: (b, 0, 0)),
        compiler_params=pltpu.CompilerParams(
            dimension_semantics=("parallel",)),
        cost_estimate=pl.CostEstimate(
            flops=flops, transcendentals=0, bytes_accessed=bytes_accessed),
    )(x, w1_k, p1, w2_k, p2)


# ---------------------------- pure-JAX reference ----------------------------
def _tdnn_layer_ref(x, w, b, bn, eps=1e-5):
    gamma, beta, mean, var = bn
    _, T, _ = x.shape
    xp = jnp.pad(x, ((0, 0), (1, 1), (0, 0)))
    z = sum(jnp.einsum('btc,oc->bto', xp[:, k:k + T, :], w[:, :, k])
            for k in range(3))
    z = jnp.maximum(z + b[None, None, :], 0.0)
    scale = gamma / jnp.sqrt(var + eps)
    shift = beta - mean * scale
    return z * scale[None, None, :] + shift[None, None, :]


def tdnn_block_v6_ref(x, w1, b1, bn1, w2, b2, bn2):
    h = _tdnn_layer_ref(x, w1, b1, bn1)
    y = _tdnn_layer_ref(h, w2, b2, bn2)
    return jnp.maximum(y + x, 0.0)


# ------------------------------------ test ----------------------------------
if __name__ == "__main__":
    key = jax.random.PRNGKey(0)
    ks = jax.random.split(key, 13)

    B, T = 2, 16
    inplanes = planes = 16
    downsample = 2
    inter = planes // downsample          # inter_connect = int(planes / downsample)

    x = jax.random.normal(ks[0], (B, T, inplanes), dtype=jnp.float32)

    w1 = 0.2 * jax.random.normal(ks[1], (inter, inplanes, 3), dtype=jnp.float32)
    b1 = 0.1 * jax.random.normal(ks[2], (inter,), dtype=jnp.float32)
    bn1 = (1.0 + 0.1 * jax.random.normal(ks[3], (inter,), dtype=jnp.float32),
           0.1 * jax.random.normal(ks[4], (inter,), dtype=jnp.float32),
           0.1 * jax.random.normal(ks[5], (inter,), dtype=jnp.float32),
           0.5 + jnp.abs(jax.random.normal(ks[6], (inter,), dtype=jnp.float32)))

    w2 = 0.2 * jax.random.normal(ks[7], (planes, inter, 3), dtype=jnp.float32)
    b2 = 0.1 * jax.random.normal(ks[8], (planes,), dtype=jnp.float32)
    bn2 = (1.0 + 0.1 * jax.random.normal(ks[9], (planes,), dtype=jnp.float32),
           0.1 * jax.random.normal(ks[10], (planes,), dtype=jnp.float32),
           0.1 * jax.random.normal(ks[11], (planes,), dtype=jnp.float32),
           0.5 + jnp.abs(jax.random.normal(ks[12], (planes,), dtype=jnp.float32)))

    out = tdnn_block_v6(x, w1, b1, bn1, w2, b2, bn2)
    out = jax.block_until_ready(out)

    ref = tdnn_block_v6_ref(x, w1, b1, bn1, w2, b2, bn2)
    assert out.shape == (B, T, planes)
    err = float(jnp.max(jnp.abs(out - ref)))
    assert err < 1e-4, f"mismatch vs pure-JAX reference: {err}"

    print("KERNEL_OK")
</pallas_src>

<mosaic_0001>
module attributes {stable_mosaic.version = 11 : i64} {
  func.func @tdnn_block_v6_kernel(%arg0: i32, %arg1: memref<1x16x16xf32, #tpu.memory_space<vmem>>, %arg2: memref<3x16x8xf32, #tpu.memory_space<vmem>>, %arg3: memref<3x8xf32, #tpu.memory_space<vmem>>, %arg4: memref<3x8x16xf32, #tpu.memory_space<vmem>>, %arg5: memref<3x16xf32, #tpu.memory_space<vmem>>, %arg6: memref<1x16x16xf32, #tpu.memory_space<vmem>>) attributes {dimension_semantics = [#tpu.dimension_semantics<parallel>], iteration_bounds = array<i64: 2>, scalar_prefetch = 0 : i64, scratch_operands = 0 : i64, tpu.core_type = #tpu.core_type<tc>, window_params = [{transform_indices = @transform_0, window_bounds = array<i64: 1, 16, 16>}, {pipeline_mode = #tpu.pipeline_mode<synchronous>, transform_indices = @transform_1, window_bounds = array<i64: 3, 16, 8>}, {pipeline_mode = #tpu.pipeline_mode<synchronous>, transform_indices = @transform_2, window_bounds = array<i64: 3, 8>}, {pipeline_mode = #tpu.pipeline_mode<synchronous>, transform_indices = @transform_3, window_bounds = array<i64: 3, 8, 16>}, {pipeline_mode = #tpu.pipeline_mode<synchronous>, transform_indices = @transform_4, window_bounds = array<i64: 3, 16>}, {transform_indices = @transform_5, window_bounds = array<i64: 1, 16, 16>}]} {
    %c0 = arith.constant 0 : index
    %c0_0 = arith.constant 0 : index
    %c0_1 = arith.constant 0 : index
    %0 = vector.load %arg1[%c0, %c0_0, %c0_1] : memref<1x16x16xf32, #tpu.memory_space<vmem>>, vector<1x16x16xf32>
    %1 = vector.shape_cast %0 : vector<1x16x16xf32> to vector<16x16xf32>
    %cst = arith.constant 0.000000e+00 : f32
    %2 = vector.broadcast %cst : f32 to vector<1x16xf32>
    %3 = vector.extract_strided_slice %1 {offsets = [0, 0], sizes = [15, 16], strides = [1, 1]} : vector<16x16xf32> to vector<15x16xf32>
    %4 = tpu.concatenate %2, %3 in 0 : vector<1x16xf32>, vector<15x16xf32> -> vector<16x16xf32>
    %c0_2 = arith.constant 0 : index
    %c0_3 = arith.constant 0 : index
    %c0_4 = arith.constant 0 : index
    %5 = vector.load %arg2[%c0_2, %c0_3, %c0_4] : memref<3x16x8xf32, #tpu.memory_space<vmem>>, vector<1x16x8xf32>
    %6 = vector.shape_cast %5 : vector<1x16x8xf32> to vector<16x8xf32>
    %cst_5 = arith.constant dense<0.000000e+00> : vector<16x8xf32>
    %7 = tpu.matmul %4, %6, %cst_5 {dimension_numbers = #tpu.dot_dimension_numbers<[1], [0], [0], [1], [0, 0, 1, 1], [], []>} : vector<16x16xf32>, vector<16x8xf32>, vector<16x8xf32> -> vector<16x8xf32>
    %c1 = arith.constant 1 : index
    %c0_6 = arith.constant 0 : index
    %c0_7 = arith.constant 0 : index
    %8 = vector.load %arg2[%c1, %c0_6, %c0_7] : memref<3x16x8xf32, #tpu.memory_space<vmem>>, vector<1x16x8xf32>
    %9 = vector.shape_cast %8 : vector<1x16x8xf32> to vector<16x8xf32>
    %cst_8 = arith.constant dense<0.000000e+00> : vector<16x8xf32>
    %10 = tpu.matmul %1, %9, %cst_8 {dimension_numbers = #tpu.dot_dimension_numbers<[1], [0], [0], [1], [0, 0, 1, 1], [], []>} : vector<16x16xf32>, vector<16x8xf32>, vector<16x8xf32> -> vector<16x8xf32>
    %11 = arith.addf %7, %10 : vector<16x8xf32>
    %12 = vector.extract_strided_slice %1 {offsets = [1, 0], sizes = [15, 16], strides = [1, 1]} : vector<16x16xf32> to vector<15x16xf32>
    %cst_9 = arith.constant 0.000000e+00 : f32
    %13 = vector.broadcast %cst_9 : f32 to vector<1x16xf32>
    %14 = tpu.concatenate %12, %13 in 0 : vector<15x16xf32>, vector<1x16xf32> -> vector<16x16xf32>
    %c2 = arith.constant 2 : index
    %c0_10 = arith.constant 0 : index
    %c0_11 = arith.constant 0 : index
    %15 = vector.load %arg2[%c2, %c0_10, %c0_11] : memref<3x16x8xf32, #tpu.memory_space<vmem>>, vector<1x16x8xf32>
    %16 = vector.shape_cast %15 : vector<1x16x8xf32> to vector<16x8xf32>
    %cst_12 = arith.constant dense<0.000000e+00> : vector<16x8xf32>
    %17 = tpu.matmul %14, %16, %cst_12 {dimension_numbers = #tpu.dot_dimension_numbers<[1], [0], [0], [1], [0, 0, 1, 1], [], []>} : vector<16x16xf32>, vector<16x8xf32>, vector<16x8xf32> -> vector<16x8xf32>
    %18 = arith.addf %11, %17 : vector<16x8xf32>
    %c0_13 = arith.constant 0 : index
    %c0_14 = arith.constant 0 : index
    %19 = vector.load %arg3[%c0_13, %c0_14] : memref<3x8xf32, #tpu.memory_space<vmem>>, vector<3x8xf32>
    %20 = vector.extract_strided_slice %19 {offsets = [0, 0], sizes = [1, 8], strides = [1, 1]} : vector<3x8xf32> to vector<1x8xf32>
    %21 = vector.broadcast %20 : vector<1x8xf32> to vector<16x8xf32>
    %22 = arith.addf %18, %21 : vector<16x8xf32>
    %cst_15 = arith.constant 0.000000e+00 : f32
    %23 = vector.broadcast %cst_15 : f32 to vector<16x8xf32>
    %24 = arith.maximumf %22, %23 : vector<16x8xf32>
    %25 = vector.extract_strided_slice %19 {offsets = [1, 0], sizes = [1, 8], strides = [1, 1]} : vector<3x8xf32> to vector<1x8xf32>
    %26 = vector.broadcast %25 : vector<1x8xf32> to vector<16x8xf32>
    %27 = arith.mulf %24, %26 : vector<16x8xf32>
    %28 = vector.extract_strided_slice %19 {offsets = [2, 0], sizes = [1, 8], strides = [1, 1]} : vector<3x8xf32> to vector<1x8xf32>
    %29 = vector.broadcast %28 : vector<1x8xf32> to vector<16x8xf32>
    %30 = arith.addf %27, %29 : vector<16x8xf32>
    %cst_16 = arith.constant 0.000000e+00 : f32
    %31 = vector.broadcast %cst_16 : f32 to vector<1x8xf32>
    %32 = vector.extract_strided_slice %30 {offsets = [0, 0], sizes = [15, 8], strides = [1, 1]} : vector<16x8xf32> to vector<15x8xf32>
    %33 = tpu.concatenate %31, %32 in 0 : vector<1x8xf32>, vector<15x8xf32> -> vector<16x8xf32>
    %c0_17 = arith.constant 0 : index
    %c0_18 = arith.constant 0 : index
    %c0_19 = arith.constant 0 : index
    %34 = vector.load %arg4[%c0_17, %c0_18, %c0_19] : memref<3x8x16xf32, #tpu.memory_space<vmem>>, vector<1x8x16xf32>
    %35 = vector.shape_cast %34 : vector<1x8x16xf32> to vector<8x16xf32>
    %cst_20 = arith.constant dense<0.000000e+00> : vector<16x16xf32>
    %36 = tpu.matmul %33, %35, %cst_20 {dimension_numbers = #tpu.dot_dimension_numbers<[1], [0], [0], [1], [0, 0, 1, 1], [], []>} : vector<16x8xf32>, vector<8x16xf32>, vector<16x16xf32> -> vector<16x16xf32>
    %c1_21 = arith.constant 1 : index
    %c0_22 = arith.constant 0 : index
    %c0_23 = arith.constant 0 : index
    %37 = vector.load %arg4[%c1_21, %c0_22, %c0_23] : memref<3x8x16xf32, #tpu.memory_space<vmem>>, vector<1x8x16xf32>
    %38 = vector.shape_cast %37 : vector<1x8x16xf32> to vector<8x16xf32>
    %cst_24 = arith.constant dense<0.000000e+00> : vector<16x16xf32>
    %39 = tpu.matmul %30, %38, %cst_24 {dimension_numbers = #tpu.dot_dimension_numbers<[1], [0], [0], [1], [0, 0, 1, 1], [], []>} : vector<16x8xf32>, vector<8x16xf32>, vector<16x16xf32> -> vector<16x16xf32>
    %40 = arith.addf %36, %39 : vector<16x16xf32>
    %41 = vector.extract_strided_slice %30 {offsets = [1, 0], sizes = [15, 8], strides = [1, 1]} : vector<16x8xf32> to vector<15x8xf32>
    %cst_25 = arith.constant 0.000000e+00 : f32
    %42 = vector.broadcast %cst_25 : f32 to vector<1x8xf32>
    %43 = tpu.concatenate %41, %42 in 0 : vector<15x8xf32>, vector<1x8xf32> -> vector<16x8xf32>
    %c2_26 = arith.constant 2 : index
    %c0_27 = arith.constant 0 : index
    %c0_28 = arith.constant 0 : index
    %44 = vector.load %arg4[%c2_26, %c0_27, %c0_28] : memref<3x8x16xf32, #tpu.memory_space<vmem>>, vector<1x8x16xf32>
    %45 = vector.shape_cast %44 : vector<1x8x16xf32> to vector<8x16xf32>
    %cst_29 = arith.constant dense<0.000000e+00> : vector<16x16xf32>
    %46 = tpu.matmul %43, %45, %cst_29 {dimension_numbers = #tpu.dot_dimension_numbers<[1], [0], [0], [1], [0, 0, 1, 1], [], []>} : vector<16x8xf32>, vector<8x16xf32>, vector<16x16xf32> -> vector<16x16xf32>
    %47 = arith.addf %40, %46 : vector<16x16xf32>
    %c0_30 = arith.constant 0 : index
    %c0_31 = arith.constant 0 : index
    %48 = vector.load %arg5[%c0_30, %c0_31] : memref<3x16xf32, #tpu.memory_space<vmem>>, vector<3x16xf32>
    %49 = vector.extract_strided_slice %48 {offsets = [0, 0], sizes = [1, 16], strides = [1, 1]} : vector<3x16xf32> to vector<1x16xf32>
    %50 = vector.broadcast %49 : vector<1x16xf32> to vector<16x16xf32>
    %51 = arith.addf %47, %50 : vector<16x16xf32>
    %cst_32 = arith.constant 0.000000e+00 : f32
    %52 = vector.broadcast %cst_32 : f32 to vector<16x16xf32>
    %53 = arith.maximumf %51, %52 : vector<16x16xf32>
    %54 = vector.extract_strided_slice %48 {offsets = [1, 0], sizes = [1, 16], strides = [1, 1]} : vector<3x16xf32> to vector<1x16xf32>
    %55 = vector.broadcast %54 : vector<1x16xf32> to vector<16x16xf32>
    %56 = arith.mulf %53, %55 : vector<16x16xf32>
    %57 = vector.extract_strided_slice %48 {offsets = [2, 0], sizes = [1, 16], strides = [1, 1]} : vector<3x16xf32> to vector<1x16xf32>
    %58 = vector.broadcast %57 : vector<1x16xf32> to vector<16x16xf32>
    %59 = arith.addf %56, %58 : vector<16x16xf32>
    %60 = arith.addf %59, %1 : vector<16x16xf32>
    %cst_33 = arith.constant 0.000000e+00 : f32
    %61 = vector.broadcast %cst_33 : f32 to vector<16x16xf32>
    %62 = arith.maximumf %60, %61 : vector<16x16xf32>
    %c0_34 = arith.constant 0 : index
    %c0_35 = arith.constant 0 : index
    %c0_36 = arith.constant 0 : index
    %63 = vector.load %arg6[%c0_34, %c0_35, %c0_36] : memref<1x16x16xf32, #tpu.memory_space<vmem>>, vector<1x16x16xf32>
    %64 = vector.shape_cast %63 : vector<1x16x16xf32> to vector<16x16xf32>
    %65 = vector.shape_cast %62 : vector<16x16xf32> to vector<1x16x16xf32>
    tpu.vector_store %arg6[%c0_34, %c0_35, %c0_36], %65 {strides = array<i32>} : memref<1x16x16xf32, #tpu.memory_space<vmem>>, vector<1x16x16xf32>,
    return
  }
  func.func @transform_0(%arg0: i32) -> (i32, i32, i32) {
    %c0_i32 = arith.constant 0 : i32
    %c0_i32_0 = arith.constant 0 : i32
    %c0_i32_1 = arith.constant 0 : i32
    return %arg0, %c0_i32, %c0_i32_0 : i32, i32, i32
  }
  func.func @transform_1(%arg0: i32) -> (i32, i32, i32) {
    %c0_i32 = arith.constant 0 : i32
    %c0_i32_0 = arith.constant 0 : i32
    %c0_i32_1 = arith.constant 0 : i32
    %c0_i32_2 = arith.constant 0 : i32
    return %c0_i32, %c0_i32_0, %c0_i32_1 : i32, i32, i32
  }
  func.func @transform_2(%arg0: i32) -> (i32, i32) {
    %c0_i32 = arith.constant 0 : i32
    %c0_i32_0 = arith.constant 0 : i32
    %c0_i32_1 = arith.constant 0 : i32
    return %c0_i32, %c0_i32_0 : i32, i32
  }
  func.func @transform_3(%arg0: i32) -> (i32, i32, i32) {
    %c0_i32 = arith.constant 0 : i32
    %c0_i32_0 = arith.constant 0 : i32
    %c0_i32_1 = arith.constant 0 : i32
    %c0_i32_2 = arith.constant 0 : i32
    return %c0_i32, %c0_i32_0, %c0_i32_1 : i32, i32, i32
  }
  func.func @transform_4(%arg0: i32) -> (i32, i32) {
    %c0_i32 = arith.constant 0 : i32
    %c0_i32_0 = arith.constant 0 : i32
    %c0_i32_1 = arith.constant 0 : i32
    return %c0_i32, %c0_i32_0 : i32, i32
  }
  func.func @transform_5(%arg0: i32) -> (i32, i32, i32) {
    %c0_i32 = arith.constant 0 : i32
    %c0_i32_0 = arith.constant 0 : i32
    %c0_i32_1 = arith.constant 0 : i32
    return %arg0, %c0_i32, %c0_i32_0 : i32, i32, i32
  }
}

</mosaic_0001>

<llo_original>
// kernel: tpu_custom_call.1
$region0: #{tpu_custom_call.1}
  #allocation0 [shape = 'u32[]', space=smem, size = 0x4, offset = 0x4, fixed_abs, tag = 'smem constant byte address 0x4 - core index']
  #allocation1 [shape = 'u32[144,128]{1,0:T(1,128)}', space=vmem, size = 0x12000, scoped, tag = 'internal scratch']
  %s0 = inlined_call_operand.vmem [shape: f32[2,16,16], index: 0, kind: input, shape index: {}]
  %s1 = inlined_call_operand.vmem [shape: f32[3,16,8], index: 1, kind: input, shape index: {}]
  %s2 = inlined_call_operand.vmem [shape: f32[3,8], index: 2, kind: input, shape index: {}]
  %s3 = inlined_call_operand.vmem [shape: f32[3,8,16], index: 3, kind: input, shape index: {}]
  %s4 = inlined_call_operand.vmem [shape: f32[3,16], index: 4, kind: input, shape index: {}]
  %s5 = inlined_call_operand.hbm [shape: f32[2,16,16], index: 5, kind: output, shape index: {}]
  %s6 = sld [smem:[#allocation0]]
  $region53: #{tpu_custom_call.1} parent=0
    _
  %s8 = ssub.s32 1, %s6
  %s9 = scalar_select 0, %s8, %s6
  $region1: #{tpu_custom_call.1} parent=0
    #allocation2 [shape = 'u8[16384]{0}', space=vmem, size = 0x4000, scoped, tag = 'output window, operand 0']
    #allocation3 [shape = 's32[2]{0}', space=sflag, size = 0x8, scoped, tag = 'scoped memory for tpu_custom_call.1']
    %10 = vsyncpa [#allocation3], 0
    %s11 = scalar_lea.sflag [#allocation3], 1
    %12 = vsyncpa %s11, 0
    loop: start=0, step=1, limit=4
    $region2: #{tpu_custom_call.1} parent=1 // loop_pre_header
      _
    $region3: #{tpu_custom_call.1} parent=1 // loop_header
      %s14 = sphi 0, %s18
      %p15 = scmp.ge.s32.totalorder %s14, 4
      %s24 = sphi 0, %s26
      %s27 = sphi 0, %s24
      %s28 = sphi 0, %s27
      %s44 = sphi 0, %s28
      %s48 = sphi 0, %s48
      %s50 = sphi 0, %s48
      %s51 = sphi 0, %s50
      %s65 = sphi 0, %s51
      %s69 = sphi 0, %s69
      %s71 = sphi 0, %s69
      %s72 = sphi 0, %s71
      %s86 = sphi 0, %s72
      %s90 = sphi 0, %s90
      %s92 = sphi 0, %s90
      %s93 = sphi 0, %s92
      %s107 = sphi 0, %s93
      %s111 = sphi 0, %s111
      %s113 = sphi 0, %s111
      %s114 = sphi 0, %s113
      %s128 = sphi 0, %s114
      %s134 = sphi 0, %s136
      %s137 = sphi 0, %s134
      %s138 = sphi 0, %s137
      %s154 = sphi 0, %s138
    $region4: #{tpu_custom_call.1} parent=1 // loop_header_branch
      %17 = sbr.rel (%p15) target = $region8
    $region5: #{tpu_custom_call.1} parent=1 // loop_body
      %s19 = ssub.s32 %s14, 1
      %s20 = ssub.s32 %s14, 2
      %s21 = sadd.s32 %s14, 1
      %s22 = ssub.s32 %s14, %s21
      %p23 = scmp.eq.s32.totalorder %s22, 0
      %s25 = sadd.s32 %s24, 1
      %s26 = scalar_select %p23, %s24, %s25
      %p29 = pneg %p23
      %p30 = scmp.eq.s32.totalorder %s14, 1
      %p31 = por %p29, %p30
      %p32 = scmp.ne.s32.totalorder %s24, %s27
      %p33 = scmp.eq.s32.totalorder %s14, 0
      %p34 = por %p32, %p33
      %p35 = scmp.ne.s32.totalorder %s24, %s27
      %p36 = scmp.eq.s32.totalorder %s19, 1
      %p37 = por %p35, %p36
      %p38 = scmp.ne.s32.totalorder %s27, %s28
      %p39 = scmp.eq.s32.totalorder %s19, 0
      %p40 = por %p38, %p39
      %p41 = scmp.ne.s32.totalorder %s27, %s28
      %p42 = scmp.eq.s32.totalorder %s20, 1
      %p43 = por %p41, %p42
      %p45 = scmp.ne.s32.totalorder %s28, %s44
      %p46 = scmp.eq.s32.totalorder %s20, 0
      %p47 = por %p45, %p46
      %s49 = sadd.s32 %s48, 1
      %p52 = scmp.eq.s32.totalorder %s14, 1
      %p53 = scmp.ne.s32.totalorder %s48, %s50
      %p54 = scmp.eq.s32.totalorder %s14, 0
      %p55 = por %p53, %p54
      %p56 = scmp.ne.s32.totalorder %s48, %s50
      %p57 = scmp.eq.s32.totalorder %s19, 1
      %p58 = por %p56, %p57
      %p59 = scmp.ne.s32.totalorder %s50, %s51
      %p60 = scmp.eq.s32.totalorder %s19, 0
      %p61 = por %p59, %p60
      %p62 = scmp.ne.s32.totalorder %s50, %s51
      %p63 = scmp.eq.s32.totalorder %s20, 1
      %p64 = por %p62, %p63
      %p66 = scmp.ne.s32.totalorder %s51, %s65
      %p67 = scmp.eq.s32.totalorder %s20, 0
      %p68 = por %p66, %p67
      %s70 = sadd.s32 %s69, 1
      %p73 = scmp.eq.s32.totalorder %s14, 1
      %p74 = scmp.ne.s32.totalorder %s69, %s71
      %p75 = scmp.eq.s32.totalorder %s14, 0
      %p76 = por %p74, %p75
      %p77 = scmp.ne.s32.totalorder %s69, %s71
      %p78 = scmp.eq.s32.totalorder %s19, 1
      %p79 = por %p77, %p78
      %p80 = scmp.ne.s32.totalorder %s71, %s72
      %p81 = scmp.eq.s32.totalorder %s19, 0
      %p82 = por %p80, %p81
      %p83 = scmp.ne.s32.totalorder %s71, %s72
      %p84 = scmp.eq.s32.totalorder %s20, 1
      %p85 = por %p83, %p84
      %p87 = scmp.ne.s32.totalorder %s72, %s86
      %p88 = scmp.eq.s32.totalorder %s20, 0
      %p89 = por %p87, %p88
      %s91 = sadd.s32 %s90, 1
      %p94 = scmp.eq.s32.totalorder %s14, 1
      %p95 = scmp.ne.s32.totalorder %s90, %s92
      %p96 = scmp.eq.s32.totalorder %s14, 0
      %p97 = por %p95, %p96
      %p98 = scmp.ne.s32.totalorder %s90, %s92
      %p99 = scmp.eq.s32.totalorder %s19, 1
      %p100 = por %p98, %p99
      %p101 = scmp.ne.s32.totalorder %s92, %s93
      %p102 = scmp.eq.s32.totalorder %s19, 0
      %p103 = por %p101, %p102
      %p104 = scmp.ne.s32.totalorder %s92, %s93
      %p105 = scmp.eq.s32.totalorder %s20, 1
      %p106 = por %p104, %p105
      %p108 = scmp.ne.s32.totalorder %s93, %s107
      %p109 = scmp.eq.s32.totalorder %s20, 0
      %p110 = por %p108, %p109
      %s112 = sadd.s32 %s111, 1
      %p115 = scmp.eq.s32.totalorder %s14, 1
      %p116 = scmp.ne.s32.totalorder %s111, %s113
      %p117 = scmp.eq.s32.totalorder %s14, 0
      %p118 = por %p116, %p117
      %p119 = scmp.ne.s32.totalorder %s111, %s113
      %p120 = scmp.eq.s32.totalorder %s19, 1
      %p121 = por %p119, %p120
      %p122 = scmp.ne.s32.totalorder %s113, %s114
      %p123 = scmp.eq.s32.totalorder %s19, 0
      %p124 = por %p122, %p123
      %p125 = scmp.ne.s32.totalorder %s113, %s114
      %p126 = scmp.eq.s32.totalorder %s20, 1
      %p127 = por %p125, %p126
      %p129 = scmp.ne.s32.totalorder %s114, %s128
      %p130 = scmp.eq.s32.totalorder %s20, 0
      %p131 = por %p129, %p130
      %s132 = ssub.s32 %s14, %s21
      %p133 = scmp.eq.s32.totalorder %s132, 0
      %s135 = sadd.s32 %s134, 1
      %s136 = scalar_select %p133, %s134, %s135
      %p139 = pneg %p133
      %p140 = scmp.eq.s32.totalorder %s14, 1
      %p141 = por %p139, %p140
      %p142 = scmp.ne.s32.totalorder %s134, %s137
      %p143 = scmp.eq.s32.totalorder %s14, 0
      %p144 = por %p142, %p143
      %p145 = scmp.ne.s32.totalorder %s134, %s137
      %p146 = scmp.eq.s32.totalorder %s19, 1
      %p147 = por %p145, %p146
      %p148 = scmp.ne.s32.totalorder %s137, %s138
      %p149 = scmp.eq.s32.totalorder %s19, 0
      %p150 = por %p148, %p149
      %p151 = scmp.ne.s32.totalorder %s137, %s138
      %p152 = scmp.eq.s32.totalorder %s20, 1
      %p153 = por %p151, %p152
      %p155 = scmp.ne.s32.totalorder %s138, %s154
      %p156 = scmp.eq.s32.totalorder %s20, 0
      %p157 = por %p155, %p156
      %p158 = scmp.le.s32.totalorder 1, %s14
      %p159 = scmp.lt.s32.totalorder %s14, 3
      %p160 = pnand %p158, %p159
      %p161 = pneg %p160
      // Predicated region
      $region9: #{tpu_custom_call.1} parent=5 // pred_check
        _
      $region10: #{tpu_custom_call.1} parent=5 // pred_check_branch
        %163 = sbr.rel (%p160) target = $region12
      $region11: #{tpu_custom_call.1} parent=5 // pred_region
        %s164 = ssub.s32 %s14, 1
        // Predicated region
        $region13: #{tpu_custom_call.1} parent=11 // pred_check
          %p165 = pneg %p61
        $region14: #{tpu_custom_call.1} parent=11 // pred_check_branch
          %167 = sbr.rel (%p165) target = $region16
        $region15: #{tpu_custom_call.1} parent=11 // pred_region
          _
        $region16: #{tpu_custom_call.1} parent=11 // pred_fallthru
          _
        // Predicated region
        $region17: #{tpu_custom_call.1} parent=11 // pred_check
          %p168 = pneg %p82
        $region18: #{tpu_custom_call.1} parent=11 // pred_check_branch
          %170 = sbr.rel (%p168) target = $region20
        $region19: #{tpu_custom_call.1} parent=11 // pred_region
          _
        $region20: #{tpu_custom_call.1} parent=11 // pred_fallthru
          _
        // Predicated region
        $region21: #{tpu_custom_call.1} parent=11 // pred_check
          %p171 = pneg %p103
        $region22: #{tpu_custom_call.1} parent=11 // pred_check_branch
          %173 = sbr.rel (%p171) target = $region24
        $region23: #{tpu_custom_call.1} parent=11 // pred_region
          _
        $region24: #{tpu_custom_call.1} parent=11 // pred_fallthru
          _
        // Predicated region
        $region25: #{tpu_custom_call.1} parent=11 // pred_check
          %p174 = pneg %p124
        $region26: #{tpu_custom_call.1} parent=11 // pred_check_branch
          %176 = sbr.rel (%p174) target = $region28
        $region27: #{tpu_custom_call.1} parent=11 // pred_region
          _
        $region28: #{tpu_custom_call.1} parent=11 // pred_fallthru
          _
      $region12: #{tpu_custom_call.1} parent=5 // pred_fallthru
        _
      %p177 = scmp.lt.s32.totalorder %s14, 2
      // Predicated region
      $region29: #{tpu_custom_call.1} parent=5 // pred_check
        %p178 = pneg %p177
      $region30: #{tpu_custom_call.1} parent=5 // pred_check_branch
        %180 = sbr.rel (%p178) target = $region32
      $region31: #{tpu_custom_call.1} parent=5 // pred_region
        // Predicated region
        $region33: #{tpu_custom_call.1} parent=31 // pred_check
          %p181 = pneg %p34
        $region34: #{tpu_custom_call.1} parent=31 // pred_check_branch
          %183 = sbr.rel (%p181) target = $region36
        $region35: #{tpu_custom_call.1} parent=31 // pred_region
          %p184 = scmp.lt.s32.totalorder %s14, 1
          %s185 = scalar_select %p184, %s14, 1
          %s186 = smul.addr %s185, 2
          %s187 = smul.addr %s186, 8
          %s188 = scalar_lea.vmem %s0, %s187
        $region36: #{tpu_custom_call.1} parent=31 // pred_fallthru
          _
      $region32: #{tpu_custom_call.1} parent=5 // pred_fallthru
        _
      %p189 = scmp.le.s32.totalorder 1, %s14
      %p190 = scmp.lt.s32.totalorder %s14, 3
      %p191 = pnand %p189, %p190
      %p192 = pneg %p191
      // Predicated region
      $region37: #{tpu_custom_call.1} parent=5 // pred_check
        _
      $region38: #{tpu_custom_call.1} parent=5 // pred_check_branch
        %194 = sbr.rel (%p191) target = $region40
      $region39: #{tpu_custom_call.1} parent=5 // pred_region
        %s195 = ssub.s32 %s14, 1
        %p196 = scmp.lt.s32.totalorder %s19, 1
        %s197 = scalar_select %p196, %s19, 1
        %s198 = smul.addr %s197, 2
        %s199 = smul.addr %s198, 8
        %s200 = scalar_lea.vmem %s0, %s199
        %p201 = pneg %p40
        %p202 = pneg %p37
        %p203 = pneg %p61
        %p204 = pneg %p58
        %p205 = pneg %p82
        %p206 = pneg %p79
        %p207 = pneg %p103
        %p208 = pneg %p100
        %p209 = pneg %p124
        %p210 = pneg %p121
        %p211 = pneg %p150
        %p212 = pneg %p147
        %s213 = sand.u32 %s137, 1
        %s214 = scalar_lea.sflag [#allocation3], %s213
        %s215 = sand.u32 %s137, 1
        %s216 = smul.addr %s215, 16
        %s217 = scalar_lea.vmem [#allocation2], %s216
        %p218 = scmp.lt.s32.totalorder %s19, 1
        %s219 = scalar_select %p218, %s19, 1
        %s220 = smul.addr %s219, 2
        %s221 = smul.addr %s220, 8
        %s222 = scalar_lea.vmem %s0, %s221
        %v223 = vld [vmem:[%s222] sm:$0xff]
        %v224 = vld [vmem:[%s222 + $0x8] sm:$0xff]
        %vm227 = vcmask 1040384
        %v228 = vrot.slane %v223, 7
        %v229 = vrot.slane %v224, 7
        %v230 = vsel %vm227, %v228, %v229
        %v232 = vsel %vm227, 0.0, %v228
        %v233 = vld [vmem:[%s1] sm:$0xff]
        %v234 = vld [vmem:[%s1 + $0x8] sm:$0xff]
        %s235 = scalar_lea.vmem %s1, 16
        %v236 = vld [vmem:[%s235] sm:$0xff]
        %v237 = vld [vmem:[%s235 + $0x8] sm:$0xff]
        %vm238 = vcmask 130048
        %v239 = vsel %vm238, %v223, 0
        %v241 = vsel %vm238, %v224, 0
        %243 = vmatprep.subr.mxu0 0.0
        %244 = vmatpush1.msra.mxu0 %v236
        %245 = vmatprep.subr.mxu0 0.0
        %246 = vmatpush1.msra.mxu0 %v237
        %247 = vmatprep.subr.mxu0 0.0
        %248 = vmatpush1.msra.mxu0 0.0
        %249 = vmatprep.subr.mxu0 0.0
        %250 = vmatpush1.msra.mxu0 0.0
        %251 = vmatprep.subr.mxu0 0.0
        %252 = vmatpush1.msra.mxu0 0.0
        %253 = vmatprep.subr.mxu0 0.0
        %254 = vmatpush1.msra.mxu0 0.0
        %255 = vmatprep.subr.mxu0 0.0
        %256 = vmatpush1.msra.mxu0 0.0
        %257 = vmatprep.subr.mxu0 0.0
        %258 = vmatpush1.msra.mxu0 0.0
        %259 = vmatprep.subr.mxu0 0.0
        %260 = vmatpush1.msra.mxu0 0.0
        %261 = vmatprep.subr.mxu0 0.0
        %262 = vmatpush1.msra.mxu0 0.0
        %263 = vmatprep.subr.mxu0 0.0
        %264 = vmatpush1.msra.mxu0 0.0
        %265 = vmatprep.subr.mxu0 0.0
        %266 = vmatpush1.msra.mxu0 0.0
        %267 = vmatprep.subr.mxu0 0.0
        %268 = vmatpush1.msra.mxu0 0.0
        %269 = vmatprep.subr.mxu0 0.0
        %270 = vmatpush1.msra.mxu0 0.0
        %271 = vmatprep.subr.mxu0 0.0
        %272 = vmatpush1.msra.mxu0 0.0
        %273 = vmatprep.subr.mxu0 0.0
        %274 = vmatpush1.msra.mxu0 0.0
        %275 = vmatprep.subr.mxu0 0.0
        %276 = vmatpush1.msra.mxu0 0.0
        %277 = vmatprep.subr.mxu0 0.0
        %278 = vmatpush1.msra.mxu0 0.0
        %279 = vmatprep.subr.mxu0 0.0
        %280 = vmatpush1.msra.mxu0 0.0
        %281 = vmatprep.subr.mxu0 0.0
        %282 = vmatpush1.msra.mxu0 0.0
        %283 = vmatprep.subr.mxu0 0.0
        %284 = vmatpush1.msra.mxu0 0.0
        %285 = vmatprep.subr.mxu0 0.0
        %286 = vmatpush1.msra.mxu0 0.0
        %287 = vmatprep.subr.mxu0 0.0
        %288 = vmatpush1.msra.mxu0 0.0
        %289 = vmatprep.subr.mxu0 0.0
        %290 = vmatpush1.msra.mxu0 0.0
        %291 = vmatprep.subr.mxu0 0.0
        %292 = vmatpush1.msra.mxu0 0.0
        %293 = vmatprep.subr.mxu0 0.0
        %294 = vmatpush1.msra.mxu0 0.0
        %295 = vmatprep.subr.mxu0 0.0
        %296 = vmatpush1.msra.mxu0 0.0
        %297 = vmatprep.subr.mxu0 0.0
        %298 = vmatpush1.msra.mxu0 0.0
        %299 = vmatprep.subr.mxu0 0.0
        %300 = vmatpush1.msra.mxu0 0.0
        %301 = vmatprep.subr.mxu0 0.0
        %302 = vmatpush1.msra.mxu0 0.0
        %303 = vmatprep.subr.mxu0 0.0
        %304 = vmatpush1.msra.mxu0 0.0
        %305 = vmatprep.subr.mxu0 0.0
        %306 = vmatpush1.msra.mxu0 0.0
        %307 = vmatprep.mubr.f32.mxu0 0.0
        %308 = vmatmul.mubr.f32.gmra.mrb[0].mxu0 %v239
        %v309 = vpop.f32.mrb[0].mxu0
        %v310 = vadd.f32 0.0, %v309
        %v311 = vpop.f32.mrb[0].mxu0
        %312 = vmatprep.mubr.f32.mxu0 0.0
        %313 = vmatmul.mubr.f32.gmra.mrb[0].mxu0 %v241
        %v314 = vpop.f32.mrb[0].mxu0
        %v315 = vadd.f32 0.0, %v314
        %v316 = vpop.f32.mrb[0].mxu0
        %317 = vdwg.mxu0
        %v319 = vsel %vm238, %v232, 0
        %v321 = vsel %vm238, %v230, 0
        %323 = vmatprep.subr.mxu0 0.0
        %324 = vmatpush1.msra.mxu0 %v233
        %325 = vmatprep.subr.mxu0 0.0
        %326 = vmatpush1.msra.mxu0 %v234
        %327 = vmatprep.subr.mxu0 0.0
        %328 = vmatpush1.msra.mxu0 0.0
        %329 = vmatprep.subr.mxu0 0.0
        %330 = vmatpush1.msra.mxu0 0.0
        %331 = vmatprep.subr.mxu0 0.0
        %332 = vmatpush1.msra.mxu0 0.0
        %333 = vmatprep.subr.mxu0 0.0
        %334 = vmatpush1.msra.mxu0 0.0
        %335 = vmatprep.subr.mxu0 0.0
        %336 = vmatpush1.msra.mxu0 0.0
        %337 = vmatprep.subr.mxu0 0.0
        %338 = vmatpush1.msra.mxu0 0.0
        %339 = vmatprep.subr.mxu0 0.0
        %340 = vmatpush1.msra.mxu0 0.0
        %341 = vmatprep.subr.mxu0 0.0
        %342 = vmatpush1.msra.mxu0 0.0
        %343 = vmatprep.subr.mxu0 0.0
        %344 = vmatpush1.msra.mxu0 0.0
        %345 = vmatprep.subr.mxu0 0.0
        %346 = vmatpush1.msra.mxu0 0.0
        %347 = vmatprep.subr.mxu0 0.0
        %348 = vmatpush1.msra.mxu0 0.0
        %349 = vmatprep.subr.mxu0 0.0
        %350 = vmatpush1.msra.mxu0 0.0
        %351 = vmatprep.subr.mxu0 0.0
        %352 = vmatpush1.msra.mxu0 0.0
        %353 = vmatprep.subr.mxu0 0.0
        %354 = vmatpush1.msra.mxu0 0.0
        %355 = vmatprep.subr.mxu0 0.0
        %356 = vmatpush1.msra.mxu0 0.0
        %357 = vmatprep.subr.mxu0 0.0
        %358 = vmatpush1.msra.mxu0 0.0
        %359 = vmatprep.subr.mxu0 0.0
        %360 = vmatpush1.msra.mxu0 0.0
        %361 = vmatprep.subr.mxu0 0.0
        %362 = vmatpush1.msra.mxu0 0.0
        %363 = vmatprep.subr.mxu0 0.0
        %364 = vmatpush1.msra.mxu0 0.0
        %365 = vmatprep.subr.mxu0 0.0
        %366 = vmatpush1.msra.mxu0 0.0
        %367 = vmatprep.subr.mxu0 0.0
        %368 = vmatpush1.msra.mxu0 0.0
        %369 = vmatprep.subr.mxu0 0.0
        %370 = vmatpush1.msra.mxu0 0.0
        %371 = vmatprep.subr.mxu0 0.0
        %372 = vmatpush1.msra.mxu0 0.0
        %373 = vmatprep.subr.mxu0 0.0
        %374 = vmatpush1.msra.mxu0 0.0
        %375 = vmatprep.subr.mxu0 0.0
        %376 = vmatpush1.msra.mxu0 0.0
        %377 = vmatprep.subr.mxu0 0.0
        %378 = vmatpush1.msra.mxu0 0.0
        %379 = vmatprep.subr.mxu0 0.0
        %380 = vmatpush1.msra.mxu0 0.0
        %381 = vmatprep.subr.mxu0 0.0
        %382 = vmatpush1.msra.mxu0 0.0
        %383 = vmatprep.subr.mxu0 0.0
        %384 = vmatpush1.msra.mxu0 0.0
        %385 = vmatprep.subr.mxu0 0.0
        %386 = vmatpush1.msra.mxu0 0.0
        %387 = vmatprep.mubr.f32.mxu0 0.0
        %388 = vmatmul.mubr.f32.gmra.mrb[0].mxu0 %v319
        %v389 = vpop.f32.mrb[0].mxu0
        %v390 = vadd.f32 %v310, %v389
        %v391 = vpop.f32.mrb[0].mxu0
        %392 = vmatprep.mubr.f32.mxu0 0.0
        %393 = vmatmul.mubr.f32.gmra.mrb[0].mxu0 %v321
        %v394 = vpop.f32.mrb[0].mxu0
        %v395 = vadd.f32 %v315, %v394
        %v396 = vpop.f32.mrb[0].mxu0
        %397 = vdwg.mxu0
        %vm398 = vcmask 1046528
        %v399 = vrot.slane %v223, 1
        %v400 = vrot.slane %v224, 1
        %v401 = vsel %vm398, %v399, %v400
        %v403 = vsel %vm398, %v400, 0.0
        %s404 = scalar_lea.vmem %s1, 32
        %v405 = vld [vmem:[%s404] sm:$0xff]
        %v406 = vld [vmem:[%s404 + $0x8] sm:$0xff]
        %v407 = vsel %vm238, %v401, 0
        %v410 = vsel %vm238, %v403, 0
        %412 = vmatprep.subr.mxu0 0.0
        %413 = vmatpush1.msra.mxu0 %v405
        %414 = vmatprep.subr.mxu0 0.0
        %415 = vmatpush1.msra.mxu0 %v406
        %416 = vmatprep.subr.mxu0 0.0
        %417 = vmatpush1.msra.mxu0 0.0
        %418 = vmatprep.subr.mxu0 0.0
        %419 = vmatpush1.msra.mxu0 0.0
        %420 = vmatprep.subr.mxu0 0.0
        %421 = vmatpush1.msra.mxu0 0.0
        %422 = vmatprep.subr.mxu0 0.0
        %423 = vmatpush1.msra.mxu0 0.0
        %424 = vmatprep.subr.mxu0 0.0
        %425 = vmatpush1.msra.mxu0 0.0
        %426 = vmatprep.subr.mxu0 0.0
        %427 = vmatpush1.msra.mxu0 0.0
        %428 = vmatprep.subr.mxu0 0.0
        %429 = vmatpush1.msra.mxu0 0.0
        %430 = vmatprep.subr.mxu0 0.0
        %431 = vmatpush1.msra.mxu0 0.0
        %432 = vmatprep.subr.mxu0 0.0
        %433 = vmatpush1.msra.mxu0 0.0
        %434 = vmatprep.subr.mxu0 0.0
        %435 = vmatpush1.msra.mxu0 0.0
        %436 = vmatprep.subr.mxu0 0.0
        %437 = vmatpush1.msra.mxu0 0.0
        %438 = vmatprep.subr.mxu0 0.0
        %439 = vmatpush1.msra.mxu0 0.0
        %440 = vmatprep.subr.mxu0 0.0
        %441 = vmatpush1.msra.mxu0 0.0
        %442 = vmatprep.subr.mxu0 0.0
        %443 = vmatpush1.msra.mxu0 0.0
        %444 = vmatprep.subr.mxu0 0.0
        %445 = vmatpush1.msra.mxu0 0.0
        %446 = vmatprep.subr.mxu0 0.0
        %447 = vmatpush1.msra.mxu0 0.0
        %448 = vmatprep.subr.mxu0 0.0
        %449 = vmatpush1.msra.mxu0 0.0
        %450 = vmatprep.subr.mxu0 0.0
        %451 = vmatpush1.msra.mxu0 0.0
        %452 = vmatprep.subr.mxu0 0.0
        %453 = vmatpush1.msra.mxu0 0.0
        %454 = vmatprep.subr.mxu0 0.0
        %455 = vmatpush1.msra.mxu0 0.0
        %456 = vmatprep.subr.mxu0 0.0
        %457 = vmatpush1.msra.mxu0 0.0
        %458 = vmatprep.subr.mxu0 0.0
        %459 = vmatpush1.msra.mxu0 0.0
        %460 = vmatprep.subr.mxu0 0.0
        %461 = vmatpush1.msra.mxu0 0.0
        %462 = vmatprep.subr.mxu0 0.0
        %463 = vmatpush1.msra.mxu0 0.0
        %464 = vmatprep.subr.mxu0 0.0
        %465 = vmatpush1.msra.mxu0 0.0
        %466 = vmatprep.subr.mxu0 0.0
        %467 = vmatpush1.msra.mxu0 0.0
        %468 = vmatprep.subr.mxu0 0.0
        %469 = vmatpush1.msra.mxu0 0.0
        %470 = vmatprep.subr.mxu0 0.0
        %471 = vmatpush1.msra.mxu0 0.0
        %472 = vmatprep.subr.mxu0 0.0
        %473 = vmatpush1.msra.mxu0 0.0
        %474 = vmatprep.subr.mxu0 0.0
        %475 = vmatpush1.msra.mxu0 0.0
        %476 = vmatprep.mubr.f32.mxu0 0.0
        %477 = vmatmul.mubr.f32.gmra.mrb[0].mxu0 %v407
        %v478 = vpop.f32.mrb[0].mxu0
        %v479 = vadd.f32 0.0, %v478
        %v480 = vpop.f32.mrb[0].mxu0
        %481 = vmatprep.mubr.f32.mxu0 0.0
        %482 = vmatmul.mubr.f32.gmra.mrb[0].mxu0 %v410
        %v483 = vpop.f32.mrb[0].mxu0
        %v484 = vadd.f32 0.0, %v483
        %v485 = vpop.f32.mrb[0].mxu0
        %486 = vdwg.mxu0
        %v487 = vadd.f32 %v390, %v479
        %v488 = vadd.f32 %v395, %v484
        %v489 = vld [vmem:[%s2] sm:$0x7]
        %v490 = vlaneseq
        %v491 = vshrl.u32 %v490, 7
        %v492 = vsub.s32 0, %v491
        %v493 = vrot.slane %v489, %v492
        %v494 = vadd.f32 %v487, %v493
        %v495 = vadd.f32 %v488, %v493
        %v496 = vmax.f32 %v494, 0.0
        %v497 = vmax.f32 %v495, 0.0
        %v498 = vlaneseq
        %v499 = vshrl.u32 %v498, 7
        %v500 = vsub.s32 1, %v499
        %v501 = vrot.slane %v489, %v500
        %v502 = vmul.f32 %v496, %v501
        %v503 = vmul.f32 %v497, %v501
        %v504 = vlaneseq
        %v505 = vshrl.u32 %v504, 7
        %v506 = vsub.s32 2, %v505
        %v507 = vrot.slane %v489, %v506
        %v508 = vadd.f32 %v502, %v507
        %v509 = vadd.f32 %v503, %v507
        %v512 = vrot.slane %v508, 7
        %v513 = vrot.slane %v509, 7
        %v514 = vsel %vm227, %v512, %v513
        %v516 = vsel %vm227, 0.0, %v512
        %v517 = vld [vmem:[%s3] sm:$0xff]
        %s518 = scalar_lea.vmem %s3, 8
        %v519 = vld [vmem:[%s518] sm:$0xff]
        %vm520 = vcmask 64512
        %v521 = vsel %vm520, %v508, 0
        %v523 = vsel %vm520, %v509, 0
        %525 = vmatprep.subr.mxu0 0.0
        %526 = vmatpush1.msra.mxu0 %v519
        %527 = vmatprep.subr.mxu0 0.0
        %528 = vmatpush1.msra.mxu0 0.0
        %529 = vmatprep.subr.mxu0 0.0
        %530 = vmatpush1.msra.mxu0 0.0
        %531 = vmatprep.subr.mxu0 0.0
        %532 = vmatpush1.msra.mxu0 0.0
        %533 = vmatprep.subr.mxu0 0.0
        %534 = vmatpush1.msra.mxu0 0.0
        %535 = vmatprep.subr.mxu0 0.0
        %536 = vmatpush1.msra.mxu0 0.0
        %537 = vmatprep.subr.mxu0 0.0
        %538 = vmatpush1.msra.mxu0 0.0
        %539 = vmatprep.subr.mxu0 0.0
        %540 = vmatpush1.msra.mxu0 0.0
        %541 = vmatprep.subr.mxu0 0.0
        %542 = vmatpush1.msra.mxu0 0.0
        %543 = vmatprep.subr.mxu0 0.0
        %544 = vmatpush1.msra.mxu0 0.0
        %545 = vmatprep.subr.mxu0 0.0
        %546 = vmatpush1.msra.mxu0 0.0
        %547 = vmatprep.subr.mxu0 0.0
        %548 = vmatpush1.msra.mxu0 0.0
        %549 = vmatprep.subr.mxu0 0.0
        %550 = vmatpush1.msra.mxu0 0.0
        %551 = vmatprep.subr.mxu0 0.0
        %552 = vmatpush1.msra.mxu0 0.0
        %553 = vmatprep.subr.mxu0 0.0
        %554 = vmatpush1.msra.mxu0 0.0
        %555 = vmatprep.subr.mxu0 0.0
        %556 = vmatpush1.msra.mxu0 0.0
        %557 = vmatprep.subr.mxu0 0.0
        %558 = vmatpush1.msra.mxu0 0.0
        %559 = vmatprep.subr.mxu0 0.0
        %560 = vmatpush1.msra.mxu0 0.0
        %561 = vmatprep.subr.mxu0 0.0
        %562 = vmatpush1.msra.mxu0 0.0
        %563 = vmatprep.subr.mxu0 0.0
        %564 = vmatpush1.msra.mxu0 0.0
        %565 = vmatprep.subr.mxu0 0.0
        %566 = vmatpush1.msra.mxu0 0.0
        %567 = vmatprep.subr.mxu0 0.0
        %568 = vmatpush1.msra.mxu0 0.0
        %569 = vmatprep.subr.mxu0 0.0
        %570 = vmatpush1.msra.mxu0 0.0
        %571 = vmatprep.subr.mxu0 0.0
        %572 = vmatpush1.msra.mxu0 0.0
        %573 = vmatprep.subr.mxu0 0.0
        %574 = vmatpush1.msra.mxu0 0.0
        %575 = vmatprep.subr.mxu0 0.0
        %576 = vmatpush1.msra.mxu0 0.0
        %577 = vmatprep.subr.mxu0 0.0
        %578 = vmatpush1.msra.mxu0 0.0
        %579 = vmatprep.subr.mxu0 0.0
        %580 = vmatpush1.msra.mxu0 0.0
        %581 = vmatprep.subr.mxu0 0.0
        %582 = vmatpush1.msra.mxu0 0.0
        %583 = vmatprep.subr.mxu0 0.0
        %584 = vmatpush1.msra.mxu0 0.0
        %585 = vmatprep.subr.mxu0 0.0
        %586 = vmatpush1.msra.mxu0 0.0
        %587 = vmatprep.subr.mxu0 0.0
        %588 = vmatpush1.msra.mxu0 0.0
        %589 = vmatprep.mubr.f32.mxu0 0.0
        %590 = vmatmul.mubr.f32.gmra.mrb[0].mxu0 %v521
        %v591 = vpop.f32.mrb[0].mxu0
        %v592 = vadd.f32 0.0, %v591
        %v593 = vpop.f32.mrb[0].mxu0
        %594 = vmatprep.mubr.f32.mxu0 0.0
        %595 = vmatmul.mubr.f32.gmra.mrb[0].mxu0 %v523
        %v596 = vpop.f32.mrb[0].mxu0
        %v597 = vadd.f32 0.0, %v596
        %v598 = vpop.f32.mrb[0].mxu0
        %599 = vdwg.mxu0
        %v601 = vsel %vm520, %v516, 0
        %v603 = vsel %vm520, %v514, 0
        %605 = vmatprep.subr.mxu0 0.0
        %606 = vmatpush1.msra.mxu0 %v517
        %607 = vmatprep.subr.mxu0 0.0
        %608 = vmatpush1.msra.mxu0 0.0
        %609 = vmatprep.subr.mxu0 0.0
        %610 = vmatpush1.msra.mxu0 0.0
        %611 = vmatprep.subr.mxu0 0.0
        %612 = vmatpush1.msra.mxu0 0.0
        %613 = vmatprep.subr.mxu0 0.0
        %614 = vmatpush1.msra.mxu0 0.0
        %615 = vmatprep.subr.mxu0 0.0
        %616 = vmatpush1.msra.mxu0 0.0
        %617 = vmatprep.subr.mxu0 0.0
        %618 = vmatpush1.msra.mxu0 0.0
        %619 = vmatprep.subr.mxu0 0.0
        %620 = vmatpush1.msra.mxu0 0.0
        %621 = vmatprep.subr.mxu0 0.0
        %622 = vmatpush1.msra.mxu0 0.0
        %623 = vmatprep.subr.mxu0 0.0
        %624 = vmatpush1.msra.mxu0 0.0
        %625 = vmatprep.subr.mxu0 0.0
        %626 = vmatpush1.msra.mxu0 0.0
        %627 = vmatprep.subr.mxu0 0.0
        %628 = vmatpush1.msra.mxu0 0.0
        %629 = vmatprep.subr.mxu0 0.0
        %630 = vmatpush1.msra.mxu0 0.0
        %631 = vmatprep.subr.mxu0 0.0
        %632 = vmatpush1.msra.mxu0 0.0
        %633 = vmatprep.subr.mxu0 0.0
        %634 = vmatpush1.msra.mxu0 0.0
        %635 = vmatprep.subr.mxu0 0.0
        %636 = vmatpush1.msra.mxu0 0.0
        %637 = vmatprep.subr.mxu0 0.0
        %638 = vmatpush1.msra.mxu0 0.0
        %639 = vmatprep.subr.mxu0 0.0
        %640 = vmatpush1.msra.mxu0 0.0
        %641 = vmatprep.subr.mxu0 0.0
        %642 = vmatpush1.msra.mxu0 0.0
        %643 = vmatprep.subr.mxu0 0.0
        %644 = vmatpush1.msra.mxu0 0.0
        %645 = vmatprep.subr.mxu0 0.0
        %646 = vmatpush1.msra.mxu0 0.0
        %647 = vmatprep.subr.mxu0 0.0
        %648 = vmatpush1.msra.mxu0 0.0
        %649 = vmatprep.subr.mxu0 0.0
        %650 = vmatpush1.msra.mxu0 0.0
        %651 = vmatprep.subr.mxu0 0.0
        %652 = vmatpush1.msra.mxu0 0.0
        %653 = vmatprep.subr.mxu0 0.0
        %654 = vmatpush1.msra.mxu0 0.0
        %655 = vmatprep.subr.mxu0 0.0
        %656 = vmatpush1.msra.mxu0 0.0
        %657 = vmatprep.subr.mxu0 0.0
        %658 = vmatpush1.msra.mxu0 0.0
        %659 = vmatprep.subr.mxu0 0.0
        %660 = vmatpush1.msra.mxu0 0.0
        %661 = vmatprep.subr.mxu0 0.0
        %662 = vmatpush1.msra.mxu0 0.0
        %663 = vmatprep.subr.mxu0 0.0
        %664 = vmatpush1.msra.mxu0 0.0
        %665 = vmatprep.subr.mxu0 0.0
        %666 = vmatpush1.msra.mxu0 0.0
        %667 = vmatprep.subr.mxu0 0.0
        %668 = vmatpush1.msra.mxu0 0.0
        %669 = vmatprep.mubr.f32.mxu0 0.0
        %670 = vmatmul.mubr.f32.gmra.mrb[0].mxu0 %v601
        %v671 = vpop.f32.mrb[0].mxu0
        %v672 = vadd.f32 %v592, %v671
        %v673 = vpop.f32.mrb[0].mxu0
        %674 = vmatprep.mubr.f32.mxu0 0.0
        %675 = vmatmul.mubr.f32.gmra.mrb[0].mxu0 %v603
        %v676 = vpop.f32.mrb[0].mxu0
        %v677 = vadd.f32 %v597, %v676
        %v678 = vpop.f32.mrb[0].mxu0
        %679 = vdwg.mxu0
        %v680 = vrot.slane %v508, 1
        %v681 = vrot.slane %v509, 1
        %v682 = vsel %vm398, %v680, %v681
        %v684 = vsel %vm398, %v681, 0.0
        %s685 = scalar_lea.vmem %s3, 16
        %v686 = vld [vmem:[%s685] sm:$0xff]
        %v687 = vsel %vm520, %v682, 0
        %v690 = vsel %vm520, %v684, 0
        %692 = vmatprep.subr.mxu0 0.0
        %693 = vmatpush1.msra.mxu0 %v686
        %694 = vmatprep.subr.mxu0 0.0
        %695 = vmatpush1.msra.mxu0 0.0
        %696 = vmatprep.subr.mxu0 0.0
        %697 = vmatpush1.msra.mxu0 0.0
        %698 = vmatprep.subr.mxu0 0.0
        %699 = vmatpush1.msra.mxu0 0.0
        %700 = vmatprep.subr.mxu0 0.0
        %701 = vmatpush1.msra.mxu0 0.0
        %702 = vmatprep.subr.mxu0 0.0
        %703 = vmatpush1.msra.mxu0 0.0
        %704 = vmatprep.subr.mxu0 0.0
        %705 = vmatpush1.msra.mxu0 0.0
        %706 = vmatprep.subr.mxu0 0.0
        %707 = vmatpush1.msra.mxu0 0.0
        %708 = vmatprep.subr.mxu0 0.0
        %709 = vmatpush1.msra.mxu0 0.0
        %710 = vmatprep.subr.mxu0 0.0
        %711 = vmatpush1.msra.mxu0 0.0
        %712 = vmatprep.subr.mxu0 0.0
        %713 = vmatpush1.msra.mxu0 0.0
        %714 = vmatprep.subr.mxu0 0.0
        %715 = vmatpush1.msra.mxu0 0.0
        %716 = vmatprep.subr.mxu0 0.0
        %717 = vmatpush1.msra.mxu0 0.0
        %718 = vmatprep.subr.mxu0 0.0
        %719 = vmatpush1.msra.mxu0 0.0
        %720 = vmatprep.subr.mxu0 0.0
        %721 = vmatpush1.msra.mxu0 0.0
        %722 = vmatprep.subr.mxu0 0.0
        %723 = vmatpush1.msra.mxu0 0.0
        %724 = vmatprep.subr.mxu0 0.0
        %725 = vmatpush1.msra.mxu0 0.0
        %726 = vmatprep.subr.mxu0 0.0
        %727 = vmatpush1.msra.mxu0 0.0
        %728 = vmatprep.subr.mxu0 0.0
        %729 = vmatpush1.msra.mxu0 0.0
        %730 = vmatprep.subr.mxu0 0.0
        %731 = vmatpush1.msra.mxu0 0.0
        %732 = vmatprep.subr.mxu0 0.0
        %733 = vmatpush1.msra.mxu0 0.0
        %734 = vmatprep.subr.mxu0 0.0
        %735 = vmatpush1.msra.mxu0 0.0
        %736 = vmatprep.subr.mxu0 0.0
        %737 = vmatpush1.msra.mxu0 0.0
        %738 = vmatprep.subr.mxu0 0.0
        %739 = vmatpush1.msra.mxu0 0.0
        %740 = vmatprep.subr.mxu0 0.0
        %741 = vmatpush1.msra.mxu0 0.0
        %742 = vmatprep.subr.mxu0 0.0
        %743 = vmatpush1.msra.mxu0 0.0
        %744 = vmatprep.subr.mxu0 0.0
        %745 = vmatpush1.msra.mxu0 0.0
        %746 = vmatprep.subr.mxu0 0.0
        %747 = vmatpush1.msra.mxu0 0.0
        %748 = vmatprep.subr.mxu0 0.0
        %749 = vmatpush1.msra.mxu0 0.0
        %750 = vmatprep.subr.mxu0 0.0
        %751 = vmatpush1.msra.mxu0 0.0
        %752 = vmatprep.subr.mxu0 0.0
        %753 = vmatpush1.msra.mxu0 0.0
        %754 = vmatprep.subr.mxu0 0.0
        %755 = vmatpush1.msra.mxu0 0.0
        %756 = vmatprep.mubr.f32.mxu0 0.0
        %757 = vmatmul.mubr.f32.gmra.mrb[0].mxu0 %v687
        %v758 = vpop.f32.mrb[0].mxu0
        %v759 = vadd.f32 0.0, %v758
        %v760 = vpop.f32.mrb[0].mxu0
        %761 = vmatprep.mubr.f32.mxu0 0.0
        %762 = vmatmul.mubr.f32.gmra.mrb[0].mxu0 %v690
        %v763 = vpop.f32.mrb[0].mxu0
        %v764 = vadd.f32 0.0, %v763
        %v765 = vpop.f32.mrb[0].mxu0
        %766 = vdwg.mxu0
        %v767 = vadd.f32 %v672, %v759
        %v768 = vadd.f32 %v677, %v764
        %v769 = vld [vmem:[%s4] sm:$0x7]
        %v770 = vlaneseq
        %v771 = vshrl.u32 %v770, 7
        %v772 = vsub.s32 0, %v771
        %v773 = vrot.slane %v769, %v772
        %v774 = vadd.f32 %v767, %v773
        %v775 = vadd.f32 %v768, %v773
        %v776 = vmax.f32 %v774, 0.0
        %v777 = vmax.f32 %v775, 0.0
        %v778 = vlaneseq
        %v779 = vshrl.u32 %v778, 7
        %v780 = vsub.s32 1, %v779
        %v781 = vrot.slane %v769, %v780
        %v782 = vmul.f32 %v776, %v781
        %v783 = vmul.f32 %v777, %v781
        %v784 = vlaneseq
        %v785 = vshrl.u32 %v784, 7
        %v786 = vsub.s32 2, %v785
        %v787 = vrot.slane %v769, %v786
        %v788 = vadd.f32 %v782, %v787
        %v789 = vadd.f32 %v783, %v787
        %v790 = vadd.f32 %v788, %v223
        %v791 = vadd.f32 %v789, %v224
        %v792 = vmax.f32 %v790, 0.0
        %v793 = vmax.f32 %v791, 0.0
        %794 = vst.msk [vmem:[%s217] sm:$0xff] %vm238, %v792
        %795 = vst.msk [vmem:[%s217 + $0x8] sm:$0xff] %vm238, %v793
        %s796 = sand.u32 %s137, 1
        %s797 = scalar_lea.sflag [#allocation3], %s796
        %s798 = sand.u32 %s137, 1
        %s799 = smul.addr %s798, 16
        %s800 = scalar_lea.vmem [#allocation2], %s799
        // Predicated region
        $region41: #{tpu_custom_call.1} parent=39 // pred_check
          %p801 = pneg %p147
        $region42: #{tpu_custom_call.1} parent=39 // pred_check_branch
          %803 = sbr.rel (%p801) target = $region44
        $region43: #{tpu_custom_call.1} parent=39 // pred_region
          %s805 = ssub.s32 256, 256
          %806 = vsyncadd %s797, %s805
          %s807 = smul.addr %s19, 2
          %s808 = smul.addr %s807, 128
          %s809 = scalar_lea.hbm %s5, %s808
          %s810 = sshll.u32 %s800, 4
          %s811 = int_to_ptr.vmem [resolvable:$true] %s810
          %816 = dma.vmem_to_hbm [thread:$0]  %s811, 256, %s809, %s797, 128, 128, 8
        $region44: #{tpu_custom_call.1} parent=39 // pred_fallthru
          _
      $region40: #{tpu_custom_call.1} parent=5 // pred_fallthru
        _
      %p817 = scmp.le.s32.totalorder 2, %s14
      // Predicated region
      $region45: #{tpu_custom_call.1} parent=5 // pred_check
        %p818 = pneg %p817
      $region46: #{tpu_custom_call.1} parent=5 // pred_check_branch
        %820 = sbr.rel (%p818) target = $region48
      $region47: #{tpu_custom_call.1} parent=5 // pred_region
        %s821 = ssub.s32 %s14, 2
        // Predicated region
        $region49: #{tpu_custom_call.1} parent=47 // pred_check
          %p822 = pneg %p153
        $region50: #{tpu_custom_call.1} parent=47 // pred_check_branch
          %824 = sbr.rel (%p822) target = $region52
        $region51: #{tpu_custom_call.1} parent=47 // pred_region
          %s825 = sand.u32 %s138, 1
          %s826 = scalar_lea.sflag [#allocation3], %s825
          %s827 = sand.u32 %s138, 1
          %s828 = smul.addr %s827, 16
          %s829 = scalar_lea.vmem [#allocation2], %s828
          %830 = dma.done %s826, 256
        $region52: #{tpu_custom_call.1} parent=47 // pred_fallthru
          _
      $region48: #{tpu_custom_call.1} parent=5 // pred_fallthru
        _
    $region6: #{tpu_custom_call.1} parent=1 // loop_footer
      %s18 = sadd.s32 1, %s14
    $region7: #{tpu_custom_call.1} parent=1 // loop_footer_branch
      %13 = sbr.rel target = $region3
    $region8: #{tpu_custom_call.1} parent=1 // loop_exit
      _
    %831 = vsyncpa [#allocation3], 1
    %s832 = scalar_lea.sflag [#allocation3], 1
    %833 = vsyncpa %s832, 1

</llo_original>
